<compile_context>
chip_gen: v5e
topology: v5e:2x2
jax: 0.10.0
libtpu: 0.0.40
codegen_flags: <defaults>
</compile_context>

<pallas_src>
import jax
import jax.numpy as jnp
from jax.experimental import pallas as pl
from jax.experimental.pallas import tpu as pltpu


def _round_up(x, m):
    return ((x + m - 1) // m) * m


def _tpu_vmem_capacity_bytes():
    try:
        return int(pltpu.get_tpu_info().vmem_capacity_bytes)
    except Exception:
        return 64 << 20  # conservative default (v7x per-TC)


def _buffered_kwargs(depth):
    """{'pipeline_mode': pl.Buffered(depth)} if supported, else {} (default 2-deep)."""
    if depth <= 2 or not hasattr(pl, "Buffered"):
        return {}
    try:
        pl.BlockSpec((8, 128), lambda i: (0, 0), pipeline_mode=pl.Buffered(depth))
    except TypeError:
        return {}
    return {"pipeline_mode": pl.Buffered(depth)}


# ---------------------------------------------------------------------------
# Stage 1: H[r, m-tile] = X[m-tile] @ W[r]   (one MXU matmul per grid step)
# ---------------------------------------------------------------------------
def _h_kernel(x_ref, w_ref, h_ref):
    h_ref[0] = jnp.dot(
        x_ref[...], w_ref[0], preferred_element_type=jnp.float32
    ).astype(h_ref.dtype)


# ---------------------------------------------------------------------------
# Stage 2: acc[i-tile] += A[r, i-tile, k-tile] @ H[r, k-tile]; bias+store at end
# ---------------------------------------------------------------------------
def _navi_kernel(a_ref, h_ref, b_ref, out_ref, acc_ref):
    r = pl.program_id(1)
    kk = pl.program_id(2)

    @pl.when(jnp.logical_and(r == 0, kk == 0))
    def _():
        acc_ref[...] = jnp.zeros_like(acc_ref)

    a = a_ref[0].astype(jnp.bfloat16)  # int8 (0/1 adjacency) -> bf16 on the VPU
    acc_ref[...] += jnp.dot(a, h_ref[0], preferred_element_type=jnp.float32)

    @pl.when(jnp.logical_and(r == pl.num_programs(1) - 1,
                             kk == pl.num_programs(2) - 1))
    def _():
        out_ref[...] = (acc_ref[...] + b_ref[...]).astype(out_ref.dtype)


def navi_forward(features, adjacencies_T, weight, bias):
    n, f_in = features.shape
    num_rel = adjacencies_T.shape[0]
    f_out = weight.shape[2]
    out_dtype = features.dtype

    vmem_cap = _tpu_vmem_capacity_bytes()

    # ---- tiling / padding ----------------------------------------------------
    f_out_pad = _round_up(f_out, 128)          # lane-dense output / MXU result
    f_in_pad = _round_up(f_in, 128)            # lane-dense stage-1 contraction
    if n <= 512:
        n_pad = _round_up(n, 32)               # int8 sublane packing
        tile_k = n_pad                         # single contraction tile
        # >= 2 row tiles so both v7x TensorCores get work on small N
        tile_n = n_pad // 2 if n_pad >= 64 else n_pad
    else:
        tile_n = 256                           # full MXU M
        tile_k = 512                           # multiple of 256 (v6e/v7x), 128 (v5e)
        n_pad = _round_up(n, 512)              # lcm(tile_n, tile_k)
    num_row_tiles = n_pad // tile_n
    num_k_tiles = n_pad // tile_k

    # ---- wrapper-side dtype / padding plumbing (no transposes, no compute) ----
    x_p = jnp.pad(features.astype(jnp.bfloat16),
                  ((0, n_pad - n), (0, f_in_pad - f_in)))
    w_p = jnp.pad(weight.astype(jnp.bfloat16),
                  ((0, 0), (0, f_in_pad - f_in), (0, f_out_pad - f_out)))
    b_p = jnp.pad(bias.astype(jnp.float32),
                  (0, f_out_pad - f_out)).reshape(1, f_out_pad)
    # A stays in its native (num_rel, N, N) layout; int8 is exact for 0/1 adjacency.
    a_p = jnp.pad(adjacencies_T.astype(jnp.int8),
                  ((0, 0), (0, n_pad - n), (0, n_pad - n)))

    # ---- stage 1: H[r] = X @ W[r] ---------------------------------------------
    h = pl.pallas_call(
        _h_kernel,
        out_shape=jax.ShapeDtypeStruct((num_rel, n_pad, f_out_pad), jnp.bfloat16),
        grid_spec=pltpu.PrefetchScalarGridSpec(
            num_scalar_prefetch=0,
            grid=(num_rel, num_row_tiles),
            in_specs=[
                pl.BlockSpec((tile_n, f_in_pad), lambda r, m: (m, 0)),          # X row tile
                pl.BlockSpec((1, f_in_pad, f_out_pad), lambda r, m: (r, 0, 0)),  # W[r]
            ],
            out_specs=pl.BlockSpec((1, tile_n, f_out_pad), lambda r, m: (r, m, 0)),
        ),
        compiler_params=pltpu.CompilerParams(
            dimension_semantics=("parallel", "parallel"),   # disjoint H blocks
        ),
    )(x_p, w_p)

    # ---- stage 2: out = sum_{r,k} A[r, i, k] @ H[r, k] + b ---------------------
    depth = 3 if vmem_cap >= (96 << 20) else 2   # deeper input buffering on v5e/v6e
    buf_kw = _buffered_kwargs(depth)

    out_bytes = jnp.dtype(out_dtype).itemsize
    need = (depth * tile_n * tile_k * 1            # A tiles (int8)
            + depth * tile_k * f_out_pad * 2       # H tiles (bf16)
            + 2 * tile_n * f_out_pad * out_bytes   # output double buffer
            + tile_n * f_out_pad * 4               # f32 accumulator scratch
            + 2 * f_out_pad * 4                    # bias
            + (4 << 20))                           # Mosaic internal scratch headroom
    vmem_limit = int(min(max(need, 16 << 20), (vmem_cap * 3) // 4))

    cost = pl.CostEstimate(
        flops=2 * num_rel * n_pad * n_pad * f_out_pad,
        transcendentals=0,
        bytes_accessed=(num_rel * n_pad * n_pad * 1
                        + num_row_tiles * num_rel * n_pad * f_out_pad * 2
                        + n_pad * f_out_pad * out_bytes),
    )

    out_pad = pl.pallas_call(
        _navi_kernel,
        out_shape=jax.ShapeDtypeStruct((n_pad, f_out_pad), out_dtype),
        grid_spec=pltpu.PrefetchScalarGridSpec(
            num_scalar_prefetch=0,
            grid=(num_row_tiles, num_rel, num_k_tiles),
            in_specs=[
                pl.BlockSpec((1, tile_n, tile_k),
                             lambda i, r, kk: (r, i, kk), **buf_kw),       # A tile
                pl.BlockSpec((1, tile_k, f_out_pad),
                             lambda i, r, kk: (r, kk, 0), **buf_kw),       # H tile
                pl.BlockSpec((1, f_out_pad), lambda i, r, kk: (0, 0)),     # bias
            ],
            out_specs=pl.BlockSpec((tile_n, f_out_pad), lambda i, r, kk: (i, 0)),
            scratch_shapes=[pltpu.VMEM((tile_n, f_out_pad), jnp.float32)],
        ),
        compiler_params=pltpu.CompilerParams(
            # row tiles independent (megacore), (relation, K) are the reduction
            dimension_semantics=("parallel", "arbitrary", "arbitrary"),
            vmem_limit_bytes=vmem_limit,
        ),
        cost_estimate=cost,
    )(a_p, h, b_p)

    return out_pad[:n, :f_out]


if __name__ == "__main__":
    # small shapes consistent with the module: N nodes, num_rel relations
    N = 16
    INPUT_SIZE = 32
    OUTPUT_SIZE = 32
    NUM_REL = 4

    key = jax.random.PRNGKey(0)
    k_feat, k_adj, k_w, k_b = jax.random.split(key, 4)

    features = jax.random.normal(k_feat, (N, INPUT_SIZE), dtype=jnp.float32)
    # dense transposed adjacency per relation (binary, deterministic)
    adjacencies_T = (jax.random.uniform(k_adj, (NUM_REL, N, N)) < 0.3).astype(
        jnp.float32)

    # deterministic parameter init (xavier-like scale), not a checkpoint load
    w_scale = (6.0 / (INPUT_SIZE + OUTPUT_SIZE)) ** 0.5
    weight = jax.random.uniform(
        k_w, (NUM_REL, INPUT_SIZE, OUTPUT_SIZE), minval=-w_scale, maxval=w_scale
    ).astype(jnp.float32)
    bias = jax.random.uniform(
        k_b, (OUTPUT_SIZE,), minval=-w_scale, maxval=w_scale
    ).astype(jnp.float32)

    out = jax.jit(navi_forward)(features, adjacencies_T, weight, bias)
    out = jax.block_until_ready(out)

    # reference check in plain JAX (f32); kernel feeds the MXU bf16 X/W (the
    # 0/1 adjacency is exact via int8), so a modest tolerance is needed.
    ref = jnp.einsum("rnm,mi,rio->no", adjacencies_T, features, weight) + bias[None, :]
    assert out.shape == (N, OUTPUT_SIZE)
    assert jnp.allclose(out, ref, atol=5e-2, rtol=5e-2), "mismatch vs reference"

    print("KERNEL_OK")
</pallas_src>

<mosaic_0001>
module attributes {stable_mosaic.version = 11 : i64} {
  func.func @_h_kernel(%arg0: i32, %arg1: i32, %arg2: memref<32x128xbf16, #tpu.memory_space<vmem>>, %arg3: memref<1x128x128xbf16, #tpu.memory_space<vmem>>, %arg4: memref<1x32x128xbf16, #tpu.memory_space<vmem>>) attributes {dimension_semantics = [#tpu.dimension_semantics<parallel>, #tpu.dimension_semantics<parallel>], iteration_bounds = array<i64: 4, 1>, scalar_prefetch = 0 : i64, scratch_operands = 0 : i64, tpu.core_type = #tpu.core_type<tc>, window_params = [{transform_indices = @transform_0, window_bounds = array<i64: 32, 128>}, {transform_indices = @transform_1, window_bounds = array<i64: 1, 128, 128>}, {transform_indices = @transform_2, window_bounds = array<i64: 1, 32, 128>}]} {
    %c0 = arith.constant 0 : index
    %c0_0 = arith.constant 0 : index
    %0 = vector.load %arg2[%c0, %c0_0] : memref<32x128xbf16, #tpu.memory_space<vmem>>, vector<32x128xbf16>
    %c0_1 = arith.constant 0 : index
    %c0_2 = arith.constant 0 : index
    %c0_3 = arith.constant 0 : index
    %1 = vector.load %arg3[%c0_1, %c0_2, %c0_3] : memref<1x128x128xbf16, #tpu.memory_space<vmem>>, vector<1x128x128xbf16>
    %2 = vector.shape_cast %1 : vector<1x128x128xbf16> to vector<128x128xbf16>
    %cst = arith.constant dense<0.000000e+00> : vector<32x128xf32>
    %3 = tpu.matmul %0, %2, %cst {dimension_numbers = #tpu.dot_dimension_numbers<[1], [0], [0], [1], [0, 0, 1, 1], [], []>} : vector<32x128xbf16>, vector<128x128xbf16>, vector<32x128xf32> -> vector<32x128xf32>
    %4 = arith.truncf %3 : vector<32x128xf32> to vector<32x128xbf16>
    %c0_4 = arith.constant 0 : index
    %c0_5 = arith.constant 0 : index
    %c0_6 = arith.constant 0 : index
    %5 = vector.load %arg4[%c0_4, %c0_5, %c0_6] : memref<1x32x128xbf16, #tpu.memory_space<vmem>>, vector<1x32x128xbf16>
    %6 = vector.shape_cast %5 : vector<1x32x128xbf16> to vector<32x128xbf16>
    %7 = vector.shape_cast %4 : vector<32x128xbf16> to vector<1x32x128xbf16>
    tpu.vector_store %arg4[%c0_4, %c0_5, %c0_6], %7 {strides = array<i32>} : memref<1x32x128xbf16, #tpu.memory_space<vmem>>, vector<1x32x128xbf16>,
    return
  }
  func.func @transform_0(%arg0: i32, %arg1: i32) -> (i32, i32) {
    %c0_i32 = arith.constant 0 : i32
    %c0_i32_0 = arith.constant 0 : i32
    return %arg1, %c0_i32 : i32, i32
  }
  func.func @transform_1(%arg0: i32, %arg1: i32) -> (i32, i32, i32) {
    %c0_i32 = arith.constant 0 : i32
    %c0_i32_0 = arith.constant 0 : i32
    %c0_i32_1 = arith.constant 0 : i32
    return %arg0, %c0_i32, %c0_i32_0 : i32, i32, i32
  }
  func.func @transform_2(%arg0: i32, %arg1: i32) -> (i32, i32, i32) {
    %c0_i32 = arith.constant 0 : i32
    %c0_i32_0 = arith.constant 0 : i32
    return %arg0, %arg1, %c0_i32 : i32, i32, i32
  }
}

module attributes {stable_mosaic.version = 11 : i64} {
  func.func @_navi_kernel(%arg0: i32, %arg1: i32, %arg2: i32, %arg3: memref<1x32x32xi8, #tpu.memory_space<vmem>>, %arg4: memref<1x32x128xbf16, #tpu.memory_space<vmem>>, %arg5: memref<1x128xf32, #tpu.memory_space<vmem>>, %arg6: memref<32x128xf32, #tpu.memory_space<vmem>>, %arg7: memref<32x128xf32, #tpu.memory_space<vmem>>) attributes {dimension_semantics = [#tpu.dimension_semantics<parallel>, #tpu.dimension_semantics<arbitrary>, #tpu.dimension_semantics<arbitrary>], iteration_bounds = array<i64: 1, 4, 1>, scalar_prefetch = 0 : i64, scratch_operands = 1 : i64, tpu.core_type = #tpu.core_type<tc>, window_params = [{transform_indices = @transform_0, window_bounds = array<i64: 1, 32, 32>}, {transform_indices = @transform_1, window_bounds = array<i64: 1, 32, 128>}, {pipeline_mode = #tpu.pipeline_mode<synchronous>, transform_indices = @transform_2, window_bounds = array<i64: 1, 128>}, {transform_indices = @transform_3, window_bounds = array<i64: 32, 128>}]} {
    %c0_i32 = arith.constant 0 : i32
    %0 = arith.cmpi eq, %arg1, %c0_i32 : i32
    %c0_i32_0 = arith.constant 0 : i32
    %1 = arith.cmpi eq, %arg2, %c0_i32_0 : i32
    %2 = arith.andi %0, %1 : i1
    %3 = arith.extui %2 : i1 to i32
    %c0_i32_1 = arith.constant 0 : i32
    %4 = arith.cmpi ne, %3, %c0_i32_1 : i32
    scf.if %4 {
      %cst_13 = arith.constant 0.000000e+00 : f32
      %19 = vector.broadcast %cst_13 : f32 to vector<32x128xf32>
      %c0_14 = arith.constant 0 : index
      %c0_15 = arith.constant 0 : index
      %20 = vector.load %arg7[%c0_14, %c0_15] : memref<32x128xf32, #tpu.memory_space<vmem>>, vector<32x128xf32>
      tpu.vector_store %arg7[%c0_14, %c0_15], %19 {strides = array<i32>} : memref<32x128xf32, #tpu.memory_space<vmem>>, vector<32x128xf32>,
    } else {
    }
    %c0 = arith.constant 0 : index
    %c0_2 = arith.constant 0 : index
    %c0_3 = arith.constant 0 : index
    %5 = vector.load %arg3[%c0, %c0_2, %c0_3] : memref<1x32x32xi8, #tpu.memory_space<vmem>>, vector<1x32x32xi8>
    %6 = vector.shape_cast %5 : vector<1x32x32xi8> to vector<32x32xi8>
    %7 = arith.sitofp %6 : vector<32x32xi8> to vector<32x32xbf16>
    %c0_4 = arith.constant 0 : index
    %c0_5 = arith.constant 0 : index
    %8 = vector.load %arg7[%c0_4, %c0_5] : memref<32x128xf32, #tpu.memory_space<vmem>>, vector<32x128xf32>
    %c0_6 = arith.constant 0 : index
    %c0_7 = arith.constant 0 : index
    %c0_8 = arith.constant 0 : index
    %9 = vector.load %arg4[%c0_6, %c0_7, %c0_8] : memref<1x32x128xbf16, #tpu.memory_space<vmem>>, vector<1x32x128xbf16>
    %10 = vector.shape_cast %9 : vector<1x32x128xbf16> to vector<32x128xbf16>
    %cst = arith.constant dense<0.000000e+00> : vector<32x128xf32>
    %11 = tpu.matmul %7, %10, %cst {dimension_numbers = #tpu.dot_dimension_numbers<[1], [0], [0], [1], [0, 0, 1, 1], [], []>} : vector<32x32xbf16>, vector<32x128xbf16>, vector<32x128xf32> -> vector<32x128xf32>
    %12 = arith.addf %8, %11 : vector<32x128xf32>
    %c0_9 = arith.constant 0 : index
    %c0_10 = arith.constant 0 : index
    %13 = vector.load %arg7[%c0_9, %c0_10] : memref<32x128xf32, #tpu.memory_space<vmem>>, vector<32x128xf32>
    tpu.vector_store %arg7[%c0_9, %c0_10], %12 {strides = array<i32>} : memref<32x128xf32, #tpu.memory_space<vmem>>, vector<32x128xf32>,
    %c3_i32 = arith.constant 3 : i32
    %14 = arith.cmpi eq, %arg1, %c3_i32 : i32
    %c0_i32_11 = arith.constant 0 : i32
    %15 = arith.cmpi eq, %arg2, %c0_i32_11 : i32
    %16 = arith.andi %14, %15 : i1
    %17 = arith.extui %16 : i1 to i32
    %c0_i32_12 = arith.constant 0 : i32
    %18 = arith.cmpi ne, %17, %c0_i32_12 : i32
    scf.if %18 {
      %c0_13 = arith.constant 0 : index
      %c0_14 = arith.constant 0 : index
      %19 = vector.load %arg7[%c0_13, %c0_14] : memref<32x128xf32, #tpu.memory_space<vmem>>, vector<32x128xf32>
      %c0_15 = arith.constant 0 : index
      %c0_16 = arith.constant 0 : index
      %20 = vector.load %arg5[%c0_15, %c0_16] : memref<1x128xf32, #tpu.memory_space<vmem>>, vector<1x128xf32>
      %21 = vector.broadcast %20 : vector<1x128xf32> to vector<32x128xf32>
      %22 = arith.addf %19, %21 : vector<32x128xf32>
      %c0_17 = arith.constant 0 : index
      %c0_18 = arith.constant 0 : index
      %23 = vector.load %arg6[%c0_17, %c0_18] : memref<32x128xf32, #tpu.memory_space<vmem>>, vector<32x128xf32>
      tpu.vector_store %arg6[%c0_17, %c0_18], %22 {strides = array<i32>} : memref<32x128xf32, #tpu.memory_space<vmem>>, vector<32x128xf32>,
    } else {
    }
    return
  }
  func.func @transform_0(%arg0: i32, %arg1: i32, %arg2: i32) -> (i32, i32, i32) {
    %c0_i32 = arith.constant 0 : i32
    return %arg1, %arg0, %arg2 : i32, i32, i32
  }
  func.func @transform_1(%arg0: i32, %arg1: i32, %arg2: i32) -> (i32, i32, i32) {
    %c0_i32 = arith.constant 0 : i32
    %c0_i32_0 = arith.constant 0 : i32
    return %arg1, %arg2, %c0_i32 : i32, i32, i32
  }
  func.func @transform_2(%arg0: i32, %arg1: i32, %arg2: i32) -> (i32, i32) {
    %c0_i32 = arith.constant 0 : i32
    %c0_i32_0 = arith.constant 0 : i32
    %c0_i32_1 = arith.constant 0 : i32
    return %c0_i32, %c0_i32_0 : i32, i32
  }
  func.func @transform_3(%arg0: i32, %arg1: i32, %arg2: i32) -> (i32, i32) {
    %c0_i32 = arith.constant 0 : i32
    %c0_i32_0 = arith.constant 0 : i32
    return %arg0, %c0_i32 : i32, i32
  }
}

</mosaic_0001>

<llo_original>
// kernel: navi_forward.2
$region0: #{navi_forward.2}
  #allocation0 [shape = 'u32[]', space=smem, size = 0x4, offset = 0x4, fixed_abs, tag = 'smem constant byte address 0x4 - core index']
  #allocation1 [shape = 'u32[72,128]{1,0:T(1,128)}', space=vmem, size = 0x9000, scoped, tag = 'internal scratch']
  %s0 = inlined_call_operand.vmem [shape: bf16[32,128], index: 0, kind: input, shape index: {}]
  %s1 = inlined_call_operand.vmem [shape: bf16[4,128,128], index: 1, kind: input, shape index: {}]
  %s2 = inlined_call_operand.vmem [shape: bf16[4,32,128], index: 2, kind: output, shape index: {}]
  %s3 = sld [smem:[#allocation0]]
  $region41: #{navi_forward.2} parent=0
    _
  %s5 = ssub.s32 1, %s3
  %s6 = scalar_select 0, %s5, %s3
  loop: start=0, step=1, limit=6
  $region2: #{navi_forward.2} parent=0 // loop_pre_header
    _
  $region3: #{navi_forward.2} parent=0 // loop_header
    %s8 = sphi 0, %s12
    %p9 = scmp.ge.s32.totalorder %s8, 6
    %s15 = sphi 0, %s27
    %s16 = sphi 0, %s23
    %s17 = sphi 0, %s15
    %s18 = sphi 0, %s16
    %s19 = sphi 0, %s17
    %s20 = sphi 0, %s18
    %s30 = sphi 0, %s32
    %s33 = sphi 0, %s30
    %s34 = sphi 0, %s33
    %s50 = sphi 0, %s34
    %s56 = sphi 0, %s58
    %s59 = sphi 0, %s56
    %s60 = sphi 0, %s59
    %s76 = sphi 0, %s60
    %s84 = sphi 0, %s86
    %s87 = sphi 0, %s84
    %s88 = sphi 0, %s87
    %s104 = sphi 0, %s88
  $region4: #{navi_forward.2} parent=0 // loop_header_branch
    %11 = sbr.rel (%p9) target = $region8
  $region5: #{navi_forward.2} parent=0 // loop_body
    %s13 = ssub.s32 %s8, 1
    %s14 = ssub.s32 %s8, 2
    %s21 = sadd.s32 1, %s16
    %p22 = scmp.ge.s32.totalorder %s21, 1
    %s23 = scalar_select %p22, 0, %s21
    %s24 = sadd.s32 1, %s15
    %s25 = scalar_select %p22, %s24, %s15
    %p26 = scmp.ge.s32.totalorder %s25, 4
    %s27 = scalar_select %p26, 0, %s25
    %s28 = ssub.s32 %s16, %s23
    %p29 = scmp.eq.s32.totalorder %s28, 0
    %s31 = sadd.s32 %s30, 1
    %s32 = scalar_select %p29, %s30, %s31
    %p35 = pneg %p29
    %p36 = scmp.eq.s32.totalorder %s8, 3
    %p37 = por %p35, %p36
    %p38 = scmp.ne.s32.totalorder %s30, %s33
    %p39 = scmp.eq.s32.totalorder %s8, 0
    %p40 = por %p38, %p39
    %p41 = scmp.ne.s32.totalorder %s30, %s33
    %p42 = scmp.eq.s32.totalorder %s13, 3
    %p43 = por %p41, %p42
    %p44 = scmp.ne.s32.totalorder %s33, %s34
    %p45 = scmp.eq.s32.totalorder %s13, 0
    %p46 = por %p44, %p45
    %p47 = scmp.ne.s32.totalorder %s33, %s34
    %p48 = scmp.eq.s32.totalorder %s14, 3
    %p49 = por %p47, %p48
    %p51 = scmp.ne.s32.totalorder %s34, %s50
    %p52 = scmp.eq.s32.totalorder %s14, 0
    %p53 = por %p51, %p52
    %s54 = ssub.s32 %s15, %s27
    %p55 = scmp.eq.s32.totalorder %s54, 0
    %s57 = sadd.s32 %s56, 1
    %s58 = scalar_select %p55, %s56, %s57
    %p61 = pneg %p55
    %p62 = scmp.eq.s32.totalorder %s8, 3
    %p63 = por %p61, %p62
    %p64 = scmp.ne.s32.totalorder %s56, %s59
    %p65 = scmp.eq.s32.totalorder %s8, 0
    %p66 = por %p64, %p65
    %p67 = scmp.ne.s32.totalorder %s56, %s59
    %p68 = scmp.eq.s32.totalorder %s13, 3
    %p69 = por %p67, %p68
    %p70 = scmp.ne.s32.totalorder %s59, %s60
    %p71 = scmp.eq.s32.totalorder %s13, 0
    %p72 = por %p70, %p71
    %p73 = scmp.ne.s32.totalorder %s59, %s60
    %p74 = scmp.eq.s32.totalorder %s14, 3
    %p75 = por %p73, %p74
    %p77 = scmp.ne.s32.totalorder %s60, %s76
    %p78 = scmp.eq.s32.totalorder %s14, 0
    %p79 = por %p77, %p78
    %s80 = ssub.s32 %s15, %s27
    %s81 = ssub.s32 %s16, %s23
    %s82 = sor.u32 %s80, %s81
    %p83 = scmp.eq.s32.totalorder %s82, 0
    %s85 = sadd.s32 %s84, 1
    %s86 = scalar_select %p83, %s84, %s85
    %p89 = pneg %p83
    %p90 = scmp.eq.s32.totalorder %s8, 3
    %p91 = por %p89, %p90
    %p92 = scmp.ne.s32.totalorder %s84, %s87
    %p93 = scmp.eq.s32.totalorder %s8, 0
    %p94 = por %p92, %p93
    %p95 = scmp.ne.s32.totalorder %s84, %s87
    %p96 = scmp.eq.s32.totalorder %s13, 3
    %p97 = por %p95, %p96
    %p98 = scmp.ne.s32.totalorder %s87, %s88
    %p99 = scmp.eq.s32.totalorder %s13, 0
    %p100 = por %p98, %p99
    %p101 = scmp.ne.s32.totalorder %s87, %s88
    %p102 = scmp.eq.s32.totalorder %s14, 3
    %p103 = por %p101, %p102
    %p105 = scmp.ne.s32.totalorder %s88, %s104
    %p106 = scmp.eq.s32.totalorder %s14, 0
    %p107 = por %p105, %p106
    %p108 = scmp.le.s32.totalorder 1, %s8
    %p109 = scmp.lt.s32.totalorder %s8, 5
    %p110 = pnand %p108, %p109
    %p111 = pneg %p110
    // Predicated region
    $region9: #{navi_forward.2} parent=5 // pred_check
      _
    $region10: #{navi_forward.2} parent=5 // pred_check_branch
      %113 = sbr.rel (%p110) target = $region12
    $region11: #{navi_forward.2} parent=5 // pred_region
      %s114 = ssub.s32 %s8, 1
      // Predicated region
      $region13: #{navi_forward.2} parent=11 // pred_check
        %p115 = pneg %p46
      $region14: #{navi_forward.2} parent=11 // pred_check_branch
        %117 = sbr.rel (%p115) target = $region16
      $region15: #{navi_forward.2} parent=11 // pred_region
        %s118 = smul.u32 4, %s18
        %p119 = scmp.lt.s32.totalorder %s118, 3
        %s120 = scalar_select %p119, %s118, 3
        %s121 = smul.addr %s120, 4
        %s122 = scalar_lea.vmem %s0, %s121
        %s123 = smul.u32 4, %s18
      $region16: #{navi_forward.2} parent=11 // pred_fallthru
        _
    $region12: #{navi_forward.2} parent=5 // pred_fallthru
      _
    %p124 = scmp.lt.s32.totalorder %s8, 4
    // Predicated region
    $region17: #{navi_forward.2} parent=5 // pred_check
      %p125 = pneg %p124
    $region18: #{navi_forward.2} parent=5 // pred_check_branch
      %127 = sbr.rel (%p125) target = $region20
    $region19: #{navi_forward.2} parent=5 // pred_region
      // Predicated region
      $region21: #{navi_forward.2} parent=19 // pred_check
        %p128 = pneg %p66
      $region22: #{navi_forward.2} parent=19 // pred_check_branch
        %130 = sbr.rel (%p128) target = $region24
      $region23: #{navi_forward.2} parent=19 // pred_region
        %p131 = scmp.lt.s32.totalorder %s15, 3
        %s132 = scalar_select %p131, %s15, 3
        %s133 = smul.addr %s132, 16
        %s134 = smul.addr %s133, 4
        %s135 = scalar_lea.vmem %s1, %s134
      $region24: #{navi_forward.2} parent=19 // pred_fallthru
        _
    $region20: #{navi_forward.2} parent=5 // pred_fallthru
      _
    %p136 = scmp.le.s32.totalorder 1, %s8
    %p137 = scmp.lt.s32.totalorder %s8, 5
    %p138 = pnand %p136, %p137
    %p139 = pneg %p138
    // Predicated region
    $region25: #{navi_forward.2} parent=5 // pred_check
      _
    $region26: #{navi_forward.2} parent=5 // pred_check_branch
      %141 = sbr.rel (%p138) target = $region28
    $region27: #{navi_forward.2} parent=5 // pred_region
      %s142 = ssub.s32 %s8, 1
      %s143 = smul.u32 4, %s18
      %p144 = scmp.lt.s32.totalorder %s143, 3
      %s145 = scalar_select %p144, %s143, 3
      %s146 = smul.addr %s145, 4
      %s147 = scalar_lea.vmem %s0, %s146
      %p148 = pneg %p46
      %p149 = pneg %p43
      %p150 = scmp.lt.s32.totalorder %s17, 3
      %s151 = scalar_select %p150, %s17, 3
      %s152 = smul.addr %s151, 16
      %s153 = smul.addr %s152, 4
      %s154 = scalar_lea.vmem %s1, %s153
      %p155 = pneg %p72
      %p156 = pneg %p69
      %p157 = pneg %p100
      %p158 = pneg %p97
      %s159 = smul.u32 4, %s18
      %p160 = scmp.lt.s32.totalorder %s17, 3
      %s161 = scalar_select %p160, %s17, 3
      %p162 = scmp.lt.s32.totalorder %s159, 3
      %s163 = scalar_select %p162, %s159, 3
      %s164 = smul.addr %s161, 4
      %s165 = sadd.s32 %s163, %s164
      %s166 = smul.addr %s165, 4
      %s167 = scalar_lea.vmem %s2, %s166
      %s168 = smul.u32 4, %s18
      %p169 = scmp.lt.s32.totalorder %s168, 3
      %s170 = scalar_select %p169, %s168, 3
      %s171 = smul.addr %s170, 4
      %s172 = scalar_lea.vmem %s0, %s171
      %s173 = smul.u32 4, %s18
      %p174 = scmp.lt.s32.totalorder %s17, 3
      %s175 = scalar_select %p174, %s17, 3
      %s176 = smul.addr %s175, 16
      %s177 = smul.addr %s176, 4
      %s178 = scalar_lea.vmem %s1, %s177
      %s179 = smul.u32 4, %s18
      %p180 = scmp.lt.s32.totalorder %s17, 3
      %s181 = scalar_select %p180, %s17, 3
      %p182 = scmp.lt.s32.totalorder %s179, 3
      %s183 = scalar_select %p182, %s179, 3
      %s184 = smul.addr %s181, 4
      %s185 = sadd.s32 %s183, %s184
      %s186 = smul.addr %s185, 4
      %s187 = scalar_lea.vmem %s2, %s186
      %s188 = smul.u32 4, %s18
      %v189 = vld [vmem:[%s172] sm:$0xf]
      %v190 = vld [vmem:[%s172 + $0x4] sm:$0xf]
      %v191 = vld [vmem:[%s172 + $0x8] sm:$0xf]
      %v192 = vld [vmem:[%s172 + $0xc] sm:$0xf]
      %v193 = vld [vmem:[%s178] sm:$0xf]
      %v194 = vld [vmem:[%s178 + $0x4] sm:$0xf]
      %v195 = vld [vmem:[%s178 + $0x8] sm:$0xf]
      %v196 = vld [vmem:[%s178 + $0xc] sm:$0xf]
      %v197 = vld [vmem:[%s178 + $0x10] sm:$0xf]
      %v198 = vld [vmem:[%s178 + $0x14] sm:$0xf]
      %v199 = vld [vmem:[%s178 + $0x18] sm:$0xf]
      %v200 = vld [vmem:[%s178 + $0x1c] sm:$0xf]
      %v201 = vld [vmem:[%s178 + $0x20] sm:$0xf]
      %v202 = vld [vmem:[%s178 + $0x24] sm:$0xf]
      %v203 = vld [vmem:[%s178 + $0x28] sm:$0xf]
      %v204 = vld [vmem:[%s178 + $0x2c] sm:$0xf]
      %v205 = vld [vmem:[%s178 + $0x30] sm:$0xf]
      %v206 = vld [vmem:[%s178 + $0x34] sm:$0xf]
      %v207 = vld [vmem:[%s178 + $0x38] sm:$0xf]
      %v208 = vld [vmem:[%s178 + $0x3c] sm:$0xf]
      %v213 = vunpack.c.l.b16 %v189
      %v214 = vunpack.c.l.b16 %v190
      %v215 = vunpack.c.l.b16 %v191
      %v216 = vunpack.c.l.b16 %v192
      %v217 = vpack.c.b16 %v214, %v213
      %v218 = vpack.c.b16 %v216, %v215
      %v237 = vunpack.c.l.b16 %v193
      %v238 = vunpack.c.l.b16 %v194
      %v239 = vunpack.c.l.b16 %v195
      %v240 = vunpack.c.l.b16 %v196
      %v241 = vunpack.c.l.b16 %v197
      %v242 = vunpack.c.l.b16 %v198
      %v243 = vunpack.c.l.b16 %v199
      %v244 = vunpack.c.l.b16 %v200
      %v245 = vunpack.c.l.b16 %v201
      %v246 = vunpack.c.l.b16 %v202
      %v247 = vunpack.c.l.b16 %v203
      %v248 = vunpack.c.l.b16 %v204
      %v249 = vunpack.c.l.b16 %v205
      %v250 = vunpack.c.l.b16 %v206
      %v251 = vunpack.c.l.b16 %v207
      %v252 = vunpack.c.l.b16 %v208
      %v253 = vpack.c.b16 %v238, %v237
      %v254 = vpack.c.b16 %v240, %v239
      %v255 = vpack.c.b16 %v242, %v241
      %v256 = vpack.c.b16 %v244, %v243
      %v257 = vpack.c.b16 %v246, %v245
      %v258 = vpack.c.b16 %v248, %v247
      %v259 = vpack.c.b16 %v250, %v249
      %v260 = vpack.c.b16 %v252, %v251
      %269 = vmatpush.bf16.msra.mxu0 %v260
      %270 = vmatpush.bf16.msra.mxu0 %v259
      %271 = vmatpush.bf16.msra.mxu0 %v258
      %272 = vmatpush.bf16.msra.mxu0 %v257
      %273 = vmatpush.bf16.msra.mxu0 %v256
      %274 = vmatpush.bf16.msra.mxu0 %v255
      %275 = vmatpush.bf16.msra.mxu0 %v254
      %276 = vmatpush.bf16.msra.mxu0 %v253
      %277 = vmatmul.bf16.gmra.mxu0 %v217
      %v278 = vpop.f32.mrf.mxu0
      %v279 = vadd.f32 0.0, %v278
      %v280 = vpop.f32.mrf.mxu0
      %v281 = vadd.f32 0.0, %v280
      %282 = vmatmul.bf16.gmra.mxu0 %v218
      %v283 = vpop.f32.mrf.mxu0
      %v284 = vadd.f32 0.0, %v283
      %v285 = vpop.f32.mrf.mxu0
      %v286 = vadd.f32 0.0, %v285
      %287 = vdwg.mxu0
      %v288 = vpack.c.bf16 %v279, %v279
      %v289 = vpack.c.bf16 %v281, %v281
      %v290 = vpack.c.bf16 %v284, %v284
      %v291 = vpack.c.bf16 %v286, %v286
      %292 = vst [vmem:[%s187] sm:$0xf] %v288
      %293 = vst [vmem:[%s187 + $0x4] sm:$0xf] %v289
      %294 = vst [vmem:[%s187 + $0x8] sm:$0xf] %v290
      %295 = vst [vmem:[%s187 + $0xc] sm:$0xf] %v291
      %s296 = smul.u32 4, %s18
      %p297 = scmp.lt.s32.totalorder %s17, 3
      %s298 = scalar_select %p297, %s17, 3
      %p299 = scmp.lt.s32.totalorder %s296, 3
      %s300 = scalar_select %p299, %s296, 3
      %s301 = smul.addr %s298, 4
      %s302 = sadd.s32 %s300, %s301
      %s303 = smul.addr %s302, 4
      %s304 = scalar_lea.vmem %s2, %s303
      // Predicated region
      $region29: #{navi_forward.2} parent=27 // pred_check
        %p305 = pneg %p97
      $region30: #{navi_forward.2} parent=27 // pred_check_branch
        %307 = sbr.rel (%p305) target = $region32
      $region31: #{navi_forward.2} parent=27 // pred_region
        %s308 = smul.u32 4, %s18
      $region32: #{navi_forward.2} parent=27 // pred_fallthru
        _
    $region28: #{navi_forward.2} parent=5 // pred_fallthru
      _
    %p309 = scmp.le.s32.totalorder 2, %s8
    // Predicated region
    $region33: #{navi_forward.2} parent=5 // pred_check
      %p310 = pneg %p309
    $region34: #{navi_forward.2} parent=5 // pred_check_branch
      %312 = sbr.rel (%p310) target = $region36
    $region35: #{navi_forward.2} parent=5 // pred_region
      %s313 = ssub.s32 %s8, 2
      // Predicated region
      $region37: #{navi_forward.2} parent=35 // pred_check
        %p314 = pneg %p103
      $region38: #{navi_forward.2} parent=35 // pred_check_branch
        %316 = sbr.rel (%p314) target = $region40
      $region39: #{navi_forward.2} parent=35 // pred_region
        %s317 = smul.u32 4, %s20
        %p318 = scmp.lt.s32.totalorder %s19, 3
        %s319 = scalar_select %p318, %s19, 3
        %p320 = scmp.lt.s32.totalorder %s317, 3
        %s321 = scalar_select %p320, %s317, 3
        %s322 = smul.addr %s319, 4
        %s323 = sadd.s32 %s321, %s322
        %s324 = smul.addr %s323, 4
        %s325 = scalar_lea.vmem %s2, %s324
      $region40: #{navi_forward.2} parent=35 // pred_fallthru
        _
    $region36: #{navi_forward.2} parent=5 // pred_fallthru
      _
  $region6: #{navi_forward.2} parent=0 // loop_footer
    %s12 = sadd.s32 1, %s8
  $region7: #{navi_forward.2} parent=0 // loop_footer_branch
    %7 = sbr.rel target = $region3
  $region8: #{navi_forward.2} parent=0 // loop_exit
    _

// kernel: navi_forward.3
$region0: #{navi_forward.3}
  #allocation0 [shape = 'u32[]', space=smem, size = 0x4, offset = 0x4, fixed_abs, tag = 'smem constant byte address 0x4 - core index']
  #allocation1 [shape = 'u32[72,128]{1,0:T(1,128)}', space=vmem, size = 0x9000, scoped, tag = 'internal scratch']
  #allocation2 [shape = 'f32[32,128]{1,0:T(8,128)}', space=vmem, size = 0x4000, scoped, tag = 'scratch operand']
  %s0 = inlined_call_operand.vmem [shape: s8[4,32,32], index: 0, kind: input, shape index: {}]
  %s1 = inlined_call_operand.vmem [shape: bf16[4,32,128], index: 1, kind: input, shape index: {}]
  %s2 = inlined_call_operand.vmem [shape: f32[1,128], index: 2, kind: input, shape index: {}]
  %s3 = inlined_call_operand.vmem [shape: f32[32,128], index: 3, kind: output, shape index: {}]
  %s4 = sld [smem:[#allocation0]]
  $region53: #{navi_forward.3} parent=0
    _
  %s6 = ssub.s32 1, %s4
  %s7 = scalar_select 0, %s6, %s4
  loop: start=0, step=1, limit=6
  $region2: #{navi_forward.3} parent=0 // loop_pre_header
    _
  $region3: #{navi_forward.3} parent=0 // loop_header
    %s9 = sphi 0, %s13
    %p10 = scmp.ge.s32.totalorder %s9, 6
    %s16 = sphi 0, %s35
    %s17 = sphi 0, %s31
    %s18 = sphi 0, %s27
    %s19 = sphi 0, %s16
    %s20 = sphi 0, %s17
    %s21 = sphi 0, %s18
    %s22 = sphi 0, %s19
    %s23 = sphi 0, %s20
    %s24 = sphi 0, %s21
    %s42 = sphi 0, %s44
    %s45 = sphi 0, %s42
    %s46 = sphi 0, %s45
    %s62 = sphi 0, %s46
    %s70 = sphi 0, %s72
    %s73 = sphi 0, %s70
    %s74 = sphi 0, %s73
    %s90 = sphi 0, %s74
    %s94 = sphi 0, %s94
    %s96 = sphi 0, %s94
    %s97 = sphi 0, %s96
    %s111 = sphi 0, %s97
    %s117 = sphi 0, %s119
    %s120 = sphi 0, %s117
    %s121 = sphi 0, %s120
    %s137 = sphi 0, %s121
  $region4: #{navi_forward.3} parent=0 // loop_header_branch
    %12 = sbr.rel (%p10) target = $region8
  $region5: #{navi_forward.3} parent=0 // loop_body
    %s14 = ssub.s32 %s9, 1
    %s15 = ssub.s32 %s9, 2
    %s25 = sadd.s32 1, %s18
    %p26 = scmp.ge.s32.totalorder %s25, 1
    %s27 = scalar_select %p26, 0, %s25
    %s28 = sadd.s32 1, %s17
    %s29 = scalar_select %p26, %s28, %s17
    %p30 = scmp.ge.s32.totalorder %s29, 4
    %s31 = scalar_select %p30, 0, %s29
    %s32 = sadd.s32 1, %s16
    %s33 = scalar_select %p30, %s32, %s16
    %p34 = scmp.ge.s32.totalorder %s33, 1
    %s35 = scalar_select %p34, 0, %s33
    %s36 = ssub.s32 %s17, %s31
    %s37 = ssub.s32 %s16, %s35
    %s38 = sor.u32 %s36, %s37
    %s39 = ssub.s32 %s18, %s27
    %s40 = sor.u32 %s38, %s39
    %p41 = scmp.eq.s32.totalorder %s40, 0
    %s43 = sadd.s32 %s42, 1
    %s44 = scalar_select %p41, %s42, %s43
    %p47 = pneg %p41
    %p48 = scmp.eq.s32.totalorder %s9, 3
    %p49 = por %p47, %p48
    %p50 = scmp.ne.s32.totalorder %s42, %s45
    %p51 = scmp.eq.s32.totalorder %s9, 0
    %p52 = por %p50, %p51
    %p53 = scmp.ne.s32.totalorder %s42, %s45
    %p54 = scmp.eq.s32.totalorder %s14, 3
    %p55 = por %p53, %p54
    %p56 = scmp.ne.s32.totalorder %s45, %s46
    %p57 = scmp.eq.s32.totalorder %s14, 0
    %p58 = por %p56, %p57
    %p59 = scmp.ne.s32.totalorder %s45, %s46
    %p60 = scmp.eq.s32.totalorder %s15, 3
    %p61 = por %p59, %p60
    %p63 = scmp.ne.s32.totalorder %s46, %s62
    %p64 = scmp.eq.s32.totalorder %s15, 0
    %p65 = por %p63, %p64
    %s66 = ssub.s32 %s17, %s31
    %s67 = ssub.s32 %s18, %s27
    %s68 = sor.u32 %s66, %s67
    %p69 = scmp.eq.s32.totalorder %s68, 0
    %s71 = sadd.s32 %s70, 1
    %s72 = scalar_select %p69, %s70, %s71
    %p75 = pneg %p69
    %p76 = scmp.eq.s32.totalorder %s9, 3
    %p77 = por %p75, %p76
    %p78 = scmp.ne.s32.totalorder %s70, %s73
    %p79 = scmp.eq.s32.totalorder %s9, 0
    %p80 = por %p78, %p79
    %p81 = scmp.ne.s32.totalorder %s70, %s73
    %p82 = scmp.eq.s32.totalorder %s14, 3
    %p83 = por %p81, %p82
    %p84 = scmp.ne.s32.totalorder %s73, %s74
    %p85 = scmp.eq.s32.totalorder %s14, 0
    %p86 = por %p84, %p85
    %p87 = scmp.ne.s32.totalorder %s73, %s74
    %p88 = scmp.eq.s32.totalorder %s15, 3
    %p89 = por %p87, %p88
    %p91 = scmp.ne.s32.totalorder %s74, %s90
    %p92 = scmp.eq.s32.totalorder %s15, 0
    %p93 = por %p91, %p92
    %s95 = sadd.s32 %s94, 1
    %p98 = scmp.eq.s32.totalorder %s9, 3
    %p99 = scmp.ne.s32.totalorder %s94, %s96
    %p100 = scmp.eq.s32.totalorder %s9, 0
    %p101 = por %p99, %p100
    %p102 = scmp.ne.s32.totalorder %s94, %s96
    %p103 = scmp.eq.s32.totalorder %s14, 3
    %p104 = por %p102, %p103
    %p105 = scmp.ne.s32.totalorder %s96, %s97
    %p106 = scmp.eq.s32.totalorder %s14, 0
    %p107 = por %p105, %p106
    %p108 = scmp.ne.s32.totalorder %s96, %s97
    %p109 = scmp.eq.s32.totalorder %s15, 3
    %p110 = por %p108, %p109
    %p112 = scmp.ne.s32.totalorder %s97, %s111
    %p113 = scmp.eq.s32.totalorder %s15, 0
    %p114 = por %p112, %p113
    %s115 = ssub.s32 %s16, %s35
    %p116 = scmp.eq.s32.totalorder %s115, 0
    %s118 = sadd.s32 %s117, 1
    %s119 = scalar_select %p116, %s117, %s118
    %p122 = pneg %p116
    %p123 = scmp.eq.s32.totalorder %s9, 3
    %p124 = por %p122, %p123
    %p125 = scmp.ne.s32.totalorder %s117, %s120
    %p126 = scmp.eq.s32.totalorder %s9, 0
    %p127 = por %p125, %p126
    %p128 = scmp.ne.s32.totalorder %s117, %s120
    %p129 = scmp.eq.s32.totalorder %s14, 3
    %p130 = por %p128, %p129
    %p131 = scmp.ne.s32.totalorder %s120, %s121
    %p132 = scmp.eq.s32.totalorder %s14, 0
    %p133 = por %p131, %p132
    %p134 = scmp.ne.s32.totalorder %s120, %s121
    %p135 = scmp.eq.s32.totalorder %s15, 3
    %p136 = por %p134, %p135
    %p138 = scmp.ne.s32.totalorder %s121, %s137
    %p139 = scmp.eq.s32.totalorder %s15, 0
    %p140 = por %p138, %p139
    %p141 = scmp.le.s32.totalorder 1, %s9
    %p142 = scmp.lt.s32.totalorder %s9, 5
    %p143 = pnand %p141, %p142
    %p144 = pneg %p143
    // Predicated region
    $region9: #{navi_forward.3} parent=5 // pred_check
      _
    $region10: #{navi_forward.3} parent=5 // pred_check_branch
      %146 = sbr.rel (%p143) target = $region12
    $region11: #{navi_forward.3} parent=5 // pred_region
      %s147 = ssub.s32 %s9, 1
      // Predicated region
      $region13: #{navi_forward.3} parent=11 // pred_check
        %p148 = pneg %p107
      $region14: #{navi_forward.3} parent=11 // pred_check_branch
        %150 = sbr.rel (%p148) target = $region16
      $region15: #{navi_forward.3} parent=11 // pred_region
        _
      $region16: #{navi_forward.3} parent=11 // pred_fallthru
        _
    $region12: #{navi_forward.3} parent=5 // pred_fallthru
      _
    %p151 = scmp.lt.s32.totalorder %s9, 4
    // Predicated region
    $region17: #{navi_forward.3} parent=5 // pred_check
      %p152 = pneg %p151
    $region18: #{navi_forward.3} parent=5 // pred_check_branch
      %154 = sbr.rel (%p152) target = $region20
    $region19: #{navi_forward.3} parent=5 // pred_region
      // Predicated region
      $region21: #{navi_forward.3} parent=19 // pred_check
        %p155 = pneg %p52
      $region22: #{navi_forward.3} parent=19 // pred_check_branch
        %157 = sbr.rel (%p155) target = $region24
      $region23: #{navi_forward.3} parent=19 // pred_region
        %p158 = scmp.lt.s32.totalorder %s17, 3
        %s159 = scalar_select %p158, %s17, 3
        %p160 = scmp.lt.s32.totalorder %s16, 0
        %s161 = scalar_select %p160, %s16, 0
        %p162 = scmp.lt.s32.totalorder %s18, 0
        %s163 = scalar_select %p162, %s18, 0
        %s164 = sadd.s32 %s163, %s161
        %s165 = sadd.s32 %s164, %s159
        %s166 = smul.addr %s165, 8
        %s167 = scalar_lea.vmem %s0, %s166
      $region24: #{navi_forward.3} parent=19 // pred_fallthru
        _
      // Predicated region
      $region25: #{navi_forward.3} parent=19 // pred_check
        %p168 = pneg %p80
      $region26: #{navi_forward.3} parent=19 // pred_check_branch
        %170 = sbr.rel (%p168) target = $region28
      $region27: #{navi_forward.3} parent=19 // pred_region
        %s171 = smul.u32 4, %s18
        %p172 = scmp.lt.s32.totalorder %s17, 3
        %s173 = scalar_select %p172, %s17, 3
        %p174 = scmp.lt.s32.totalorder %s171, 3
        %s175 = scalar_select %p174, %s171, 3
        %s176 = smul.addr %s173, 4
        %s177 = sadd.s32 %s175, %s176
        %s178 = smul.addr %s177, 4
        %s179 = scalar_lea.vmem %s1, %s178
        %s180 = smul.u32 4, %s18
      $region28: #{navi_forward.3} parent=19 // pred_fallthru
        _
    $region20: #{navi_forward.3} parent=5 // pred_fallthru
      _
    %p181 = scmp.le.s32.totalorder 1, %s9
    %p182 = scmp.lt.s32.totalorder %s9, 5
    %p183 = pnand %p181, %p182
    %p184 = pneg %p183
    // Predicated region
    $region29: #{navi_forward.3} parent=5 // pred_check
      _
    $region30: #{navi_forward.3} parent=5 // pred_check_branch
      %186 = sbr.rel (%p183) target = $region32
    $region31: #{navi_forward.3} parent=5 // pred_region
      %s187 = ssub.s32 %s9, 1
      %p188 = scmp.lt.s32.totalorder %s20, 3
      %s189 = scalar_select %p188, %s20, 3
      %p190 = scmp.lt.s32.totalorder %s19, 0
      %s191 = scalar_select %p190, %s19, 0
      %p192 = scmp.lt.s32.totalorder %s21, 0
      %s193 = scalar_select %p192, %s21, 0
      %s194 = sadd.s32 %s193, %s191
      %s195 = sadd.s32 %s194, %s189
      %s196 = smul.addr %s195, 8
      %s197 = scalar_lea.vmem %s0, %s196
      %p198 = pneg %p58
      %p199 = pneg %p55
      %s200 = smul.u32 4, %s21
      %p201 = scmp.lt.s32.totalorder %s20, 3
      %s202 = scalar_select %p201, %s20, 3
      %p203 = scmp.lt.s32.totalorder %s200, 3
      %s204 = scalar_select %p203, %s200, 3
      %s205 = smul.addr %s202, 4
      %s206 = sadd.s32 %s204, %s205
      %s207 = smul.addr %s206, 4
      %s208 = scalar_lea.vmem %s1, %s207
      %p209 = pneg %p86
      %p210 = pneg %p83
      %p211 = pneg %p107
      %p212 = pneg %p104
      %p213 = pneg %p133
      %p214 = pneg %p130
      %s215 = smul.u32 4, %s19
      %p216 = scmp.lt.s32.totalorder %s215, 3
      %s217 = scalar_select %p216, %s215, 3
      %s218 = smul.addr %s217, 8
      %s219 = scalar_lea.vmem %s3, %s218
      %p220 = scmp.lt.s32.totalorder %s20, 3
      %s221 = scalar_select %p220, %s20, 3
      %p222 = scmp.lt.s32.totalorder %s19, 0
      %s223 = scalar_select %p222, %s19, 0
      %p224 = scmp.lt.s32.totalorder %s21, 0
      %s225 = scalar_select %p224, %s21, 0
      %s226 = sadd.s32 %s225, %s223
      %s227 = sadd.s32 %s226, %s221
      %s228 = smul.addr %s227, 8
      %s229 = scalar_lea.vmem %s0, %s228
      %s230 = smul.u32 4, %s21
      %p231 = scmp.lt.s32.totalorder %s20, 3
      %s232 = scalar_select %p231, %s20, 3
      %p233 = scmp.lt.s32.totalorder %s230, 3
      %s234 = scalar_select %p233, %s230, 3
      %s235 = smul.addr %s232, 4
      %s236 = sadd.s32 %s234, %s235
      %s237 = smul.addr %s236, 4
      %s238 = scalar_lea.vmem %s1, %s237
      %s239 = smul.u32 4, %s21
      %s240 = smul.u32 4, %s19
      %p241 = scmp.lt.s32.totalorder %s240, 3
      %s242 = scalar_select %p241, %s240, 3
      %s243 = smul.addr %s242, 8
      %s244 = scalar_lea.vmem %s3, %s243
      %s245 = smul.u32 4, %s19
      %p247 = scmp.eq.s32.totalorder %s20, 0
      %p248 = scmp.eq.s32.totalorder %s21, 0
      %p249 = pnand %p247, %p248
      %p250 = pneg %p249
      // Predicated region
      $region33: #{navi_forward.3} parent=31 // pred_check
        _
      $region34: #{navi_forward.3} parent=31 // pred_check_branch
        %252 = sbr.rel (%p249) target = $region36
      $region35: #{navi_forward.3} parent=31 // pred_region
        %253 = vst [vmem:[#allocation2] sm:$0xff] 0.0
        %254 = vst [vmem:[#allocation2 + $0x8] sm:$0xff] 0.0
        %255 = vst [vmem:[#allocation2 + $0x10] sm:$0xff] 0.0
        %256 = vst [vmem:[#allocation2 + $0x18] sm:$0xff] 0.0
      $region36: #{navi_forward.3} parent=31 // pred_fallthru
        _
      %v257 = vld [vmem:[%s229] sm:$0xff]
      %v258 = vunpack.c.0.s8 %v257
      %v259 = vunpack.c.1.s8 %v257
      %v260 = vunpack.c.2.s8 %v257
      %v261 = vunpack.c.3.s8 %v257
      %v262 = vcvt.s32.f32 %v258
      %v263 = vcvt.s32.f32 %v259
      %v264 = vcvt.s32.f32 %v260
      %v265 = vcvt.s32.f32 %v261
      %v266 = vpack.c.bf16 %v263, %v262
      %v267 = vpack.c.bf16 %v265, %v264
      %v268 = vld [vmem:[#allocation2] sm:$0xff]
      %v269 = vld [vmem:[#allocation2 + $0x8] sm:$0xff]
      %v270 = vld [vmem:[#allocation2 + $0x10] sm:$0xff]
      %v271 = vld [vmem:[#allocation2 + $0x18] sm:$0xff]
      %v272 = vld [vmem:[%s238] sm:$0xf]
      %v273 = vld [vmem:[%s238 + $0x4] sm:$0xf]
      %v274 = vld [vmem:[%s238 + $0x8] sm:$0xf]
      %v275 = vld [vmem:[%s238 + $0xc] sm:$0xf]
      %v280 = vunpack.c.l.b16 %v272
      %v281 = vunpack.c.l.b16 %v273
      %v282 = vunpack.c.l.b16 %v274
      %v283 = vunpack.c.l.b16 %v275
      %v284 = vpack.c.b16 %v281, %v280
      %v285 = vpack.c.b16 %v283, %v282
      %vm288 = vcmask 261120
      %v290 = vsel %vm288, %v266, 0
      %v293 = vsel %vm288, %v267, 0
      %295 = vmatpush.bf16.msra.mxu0 0
      %296 = vmatpush.bf16.msra.mxu0 0
      %297 = vmatpush.bf16.msra.mxu0 0
      %298 = vmatpush.bf16.msra.mxu0 0
      %299 = vmatpush.bf16.msra.mxu0 0
      %300 = vmatpush.bf16.msra.mxu0 0
      %301 = vmatpush.bf16.msra.mxu0 %v285
      %302 = vmatpush.bf16.msra.mxu0 %v284
      %303 = vmatmul.bf16.gmra.mxu0 %v290
      %v304 = vpop.f32.mrf.mxu0
      %v305 = vadd.f32 0.0, %v304
      %v306 = vpop.f32.mrf.mxu0
      %v307 = vadd.f32 0.0, %v306
      %308 = vmatmul.bf16.gmra.mxu0 %v293
      %v309 = vpop.f32.mrf.mxu0
      %v310 = vadd.f32 0.0, %v309
      %v311 = vpop.f32.mrf.mxu0
      %v312 = vadd.f32 0.0, %v311
      %313 = vdwg.mxu0
      %v314 = vadd.f32 %v268, %v305
      %v315 = vadd.f32 %v269, %v307
      %v316 = vadd.f32 %v270, %v310
      %v317 = vadd.f32 %v271, %v312
      %318 = vst [vmem:[#allocation2] sm:$0xff] %v314
      %319 = vst [vmem:[#allocation2 + $0x8] sm:$0xff] %v315
      %320 = vst [vmem:[#allocation2 + $0x10] sm:$0xff] %v316
      %321 = vst [vmem:[#allocation2 + $0x18] sm:$0xff] %v317
      %p322 = scmp.eq.s32.totalorder %s20, 3
      %p323 = pnand %p322, %p248
      %p324 = pneg %p323
      // Predicated region
      $region37: #{navi_forward.3} parent=31 // pred_check
        _
      $region38: #{navi_forward.3} parent=31 // pred_check_branch
        %326 = sbr.rel (%p323) target = $region40
      $region39: #{navi_forward.3} parent=31 // pred_region
        %v327 = vld [vmem:[#allocation2] sm:$0xff]
        %v328 = vld [vmem:[#allocation2 + $0x8] sm:$0xff]
        %v329 = vld [vmem:[#allocation2 + $0x10] sm:$0xff]
        %v330 = vld [vmem:[#allocation2 + $0x18] sm:$0xff]
        %v331 = vld [vmem:[%s2] sm:$0x1]
        %v333 = vperm.slane %v331, 0
        %v335 = vadd.f32 %v327, %v333
        %v336 = vadd.f32 %v328, %v333
        %v337 = vadd.f32 %v329, %v333
        %v338 = vadd.f32 %v330, %v333
        %339 = vst [vmem:[%s244] sm:$0xff] %v335
        %340 = vst [vmem:[%s244 + $0x8] sm:$0xff] %v336
        %341 = vst [vmem:[%s244 + $0x10] sm:$0xff] %v337
        %342 = vst [vmem:[%s244 + $0x18] sm:$0xff] %v338
      $region40: #{navi_forward.3} parent=31 // pred_fallthru
        _
      %s343 = smul.u32 4, %s19
      %p344 = scmp.lt.s32.totalorder %s343, 3
      %s345 = scalar_select %p344, %s343, 3
      %s346 = smul.addr %s345, 8
      %s347 = scalar_lea.vmem %s3, %s346
      // Predicated region
      $region41: #{navi_forward.3} parent=31 // pred_check
        %p348 = pneg %p130
      $region42: #{navi_forward.3} parent=31 // pred_check_branch
        %350 = sbr.rel (%p348) target = $region44
      $region43: #{navi_forward.3} parent=31 // pred_region
        %s351 = smul.u32 4, %s19
      $region44: #{navi_forward.3} parent=31 // pred_fallthru
        _
      // Predicated region
      $region45: #{navi_forward.3} parent=31 // pred_check
        %p352 = pneg %p130
      $region46: #{navi_forward.3} parent=31 // pred_check_branch
        %354 = sbr.rel (%p352) target = $region48
      $region47: #{navi_forward.3} parent=31 // pred_region
        %s355 = smul.u32 4, %s19
        %p356 = scmp.lt.s32.totalorder %s355, 3
        %s357 = scalar_select %p356, %s355, 3
        %s358 = smul.addr %s357, 8
        %s359 = scalar_lea.vmem %s3, %s358
      $region48: #{navi_forward.3} parent=31 // pred_fallthru
        _
    $region32: #{navi_forward.3} parent=5 // pred_fallthru
      _
    %p360 = scmp.le.s32.totalorder 2, %s9
    // Predicated region
    $region49: #{navi_forward.3} parent=5 // pred_check
      %p361 = pneg %p360
    $region50: #{navi_forward.3} parent=5 // pred_check_branch
      %363 = sbr.rel (%p361) target = $region52
    $region51: #{navi_forward.3} parent=5 // pred_region
      %s364 = ssub.s32 %s9, 2
    $region52: #{navi_forward.3} parent=5 // pred_fallthru
      _
  $region6: #{navi_forward.3} parent=0 // loop_footer
    %s13 = sadd.s32 1, %s9
  $region7: #{navi_forward.3} parent=0 // loop_footer_branch
    %8 = sbr.rel target = $region3
  $region8: #{navi_forward.3} parent=0 // loop_exit
    _

</llo_original>
